<compile_context>
chip_gen: v5e
topology: v5e:2x2
jax: 0.10.0
libtpu: 0.0.40
codegen_flags: <defaults>
</compile_context>

<pallas_src>
import math

import jax
import jax.numpy as jnp
from jax.experimental import pallas as pl
from jax.experimental.pallas import tpu as pltpu

_LANE_TARGET = 2048            # target last-dim width (multiple of 128 preferred)
_BLOCK_BYTES = 4 << 20         # ~4 MiB per block; 2 in + 2 out bufs ~= 16 MiB VMEM
_VMEM_LIMIT = 32 * 1024 * 1024


def _lorenz_kernel(x_ref, a_ref, o_ref):
    x = x_ref[...].astype(jnp.float32)            # (TR, W)
    a = a_ref[...]                                # (1, W) f32, broadcasts over rows
    o_ref[...] = (x * (a - 0.02 * x)).astype(o_ref.dtype)


def _choose_k(H, rows):
    """Pick k with k | rows (pad-free reshape), k*H % 128 == 0 if achievable,
    and k*H around _LANE_TARGET."""
    if H % 128 == 0:
        max_k = max(1, min(rows, _LANE_TARGET // H))
        for cand in range(max_k, 0, -1):          # bounded by _LANE_TARGET//128 = 16
            if rows % cand == 0:
                return cand
        return 1
    # Minimal k making k*H a multiple of 128: lcm(H,128)/H.
    k0 = 128 // math.gcd(H, 128)
    if rows % k0 == 0:
        max_mult = max(1, _LANE_TARGET // (k0 * H))
        for m in range(max_mult, 0, -1):
            if rows % (m * k0) == 0:
                return m * k0
        return k0
    # TODO(synk): no pad-free multiple-of-128 width exists for this (H, rows);
    # fall back to W = H, which costs masked partial lane stores.
    return 1


def lorenz_layer2(x, sigma, rho, beta, *, min_pallas_elems: int = 0):
    """out = x + (sigma*x + (rho*x - x**2) + (x*beta - x**2)) * 0.01  (elementwise).

    x: (..., H);  sigma/rho/beta: (H,).
    """
    orig_shape = x.shape
    H = orig_shape[-1]
    dtype = x.dtype
    itemsize = jnp.dtype(dtype).itemsize

    # Fold the three parameters into one f32 coefficient.
    a = 1.0 + 0.01 * (sigma.astype(jnp.float32)
                      + rho.astype(jnp.float32)
                      + beta.astype(jnp.float32))

    total = math.prod(orig_shape)
    rows = total // H

    # Tiny inputs: let XLA fuse the plain expression (launch overhead dominates).
    if total < min_pallas_elems:
        xf = x.astype(jnp.float32)
        return (xf * (a - 0.02 * xf)).astype(dtype)

    # ---- lane-dense layout, pad-free: x.reshape(R, W) with W = k*H, k | rows ----
    k = _choose_k(H, rows)
    W = k * H
    R = rows // k
    a_row = jnp.tile(a, k).reshape(1, W) if k > 1 else a.reshape(1, W)

    row_bytes = W * itemsize
    if R <= 16:
        TR = R                                            # single full-extent block
    else:
        TR = max(16, (_BLOCK_BYTES // row_bytes) // 16 * 16)
        # Keep 2 in-bufs + 2 out-bufs comfortably under the scoped-VMEM limit
        # (v7x: 64 MiB physical, 32 MiB scoped default; compute budget in f32-width).
        max_tr = (3 * _VMEM_LIMIT // 4) // (4 * W * max(4, itemsize))
        TR = min(TR, max(16, (max_tr // 16) * 16))
        # >= 2 grid steps so "parallel" spreads blocks over both TensorCores (v7x).
        half = -(-R // 2)                                 # ceil(R/2)
        TR = min(TR, -(-half // 16) * 16)

    grid = (pl.cdiv(R, TR),)
    # If TR does not divide R, the last block is partial: OOB reads are garbage and
    # OOB writes are masked by Pallas.  Safe here because the op is purely
    # elementwise (each output element depends only on its own input element).

    x2d = x.reshape(R, W)

    out2d = pl.pallas_call(
        _lorenz_kernel,
        out_shape=jax.ShapeDtypeStruct((R, W), dtype),
        grid_spec=pltpu.PrefetchScalarGridSpec(
            num_scalar_prefetch=0,
            grid=grid,
            in_specs=[
                pl.BlockSpec((TR, W), lambda i: (i, 0)),   # x tile
                pl.BlockSpec((1, W), lambda i: (0, 0)),    # fused coefficient row
            ],
            out_specs=pl.BlockSpec((TR, W), lambda i: (i, 0)),
        ),
        compiler_params=pltpu.CompilerParams(
            dimension_semantics=("parallel",),             # megacore sharding (v7x)
            vmem_limit_bytes=_VMEM_LIMIT,                  # v5e default is only 16 MiB
        ),
        # No input_output_aliases: aliasing onto a reshaped, non-donated input would
        # force XLA to insert a defensive full copy (extra HBM read+write pass).
    )(x2d, a_row)

    return out2d.reshape(orig_shape)


if __name__ == "__main__":
    key = jax.random.PRNGKey(0)
    fn = jax.jit(lorenz_layer2)

    ok = True
    # Cases cover: module-default H=128, ragged batch, 3-D input, H=100 with the
    # lcm-based lane widening (k0=32), and H=100 where only W=H is pad-free.
    cases = [
        (16, 128),
        (37, 128),
        (2, 5, 128),
        (64, 100),
        (37, 100),
    ]
    for shape in cases:
        H = shape[-1]
        key, k_s, k_r, k_b, k_x = jax.random.split(key, 5)
        # Module initializes parameters to ones; perturb so the per-channel
        # broadcast is actually exercised.
        sigma = 1.0 + 0.1 * jax.random.normal(k_s, (H,), dtype=jnp.float32)
        rho = 1.0 + 0.1 * jax.random.normal(k_r, (H,), dtype=jnp.float32)
        beta = 1.0 + 0.1 * jax.random.normal(k_b, (H,), dtype=jnp.float32)
        x = jax.random.normal(k_x, shape, dtype=jnp.float32)

        out = jax.block_until_ready(fn(x, sigma, rho, beta))

        # Pure-JAX reference with the original (PyTorch) op order.
        ref = x + (sigma * x + (rho * x - x ** 2) + (x * beta - x ** 2)) * 0.01
        if not jnp.allclose(out, ref, atol=1e-6, rtol=1e-5):
            ok = False
            print("MISMATCH for shape", shape,
                  "max_abs_err=", float(jnp.max(jnp.abs(out - ref))))

    if ok:
        print("KERNEL_OK")
</pallas_src>

<mosaic_0001>
module attributes {stable_mosaic.version = 11 : i64} {
  func.func @_lorenz_kernel(%arg0: i32, %arg1: memref<1x2048xf32, #tpu.memory_space<vmem>>, %arg2: memref<1x2048xf32, #tpu.memory_space<vmem>>, %arg3: memref<1x2048xf32, #tpu.memory_space<vmem>>) attributes {dimension_semantics = [#tpu.dimension_semantics<parallel>], iteration_bounds = array<i64: 1>, scalar_prefetch = 0 : i64, scratch_operands = 0 : i64, tpu.core_type = #tpu.core_type<tc>, window_params = [{transform_indices = @transform_0, window_bounds = array<i64: 1, 2048>}, {pipeline_mode = #tpu.pipeline_mode<synchronous>, transform_indices = @transform_1, window_bounds = array<i64: 1, 2048>}, {transform_indices = @transform_2, window_bounds = array<i64: 1, 2048>}]} {
    %c0 = arith.constant 0 : index
    %c0_0 = arith.constant 0 : index
    %0 = vector.load %arg1[%c0, %c0_0] : memref<1x2048xf32, #tpu.memory_space<vmem>>, vector<1x2048xf32>
    %c0_1 = arith.constant 0 : index
    %c0_2 = arith.constant 0 : index
    %1 = vector.load %arg2[%c0_1, %c0_2] : memref<1x2048xf32, #tpu.memory_space<vmem>>, vector<1x2048xf32>
    %cst = arith.constant 2.000000e-02 : f32
    %2 = vector.broadcast %cst : f32 to vector<1x2048xf32>
    %3 = arith.mulf %2, %0 : vector<1x2048xf32>
    %4 = arith.subf %1, %3 : vector<1x2048xf32>
    %5 = arith.mulf %0, %4 : vector<1x2048xf32>
    %c0_3 = arith.constant 0 : index
    %c0_4 = arith.constant 0 : index
    %6 = vector.load %arg3[%c0_3, %c0_4] : memref<1x2048xf32, #tpu.memory_space<vmem>>, vector<1x2048xf32>
    tpu.vector_store %arg3[%c0_3, %c0_4], %5 {strides = array<i32>} : memref<1x2048xf32, #tpu.memory_space<vmem>>, vector<1x2048xf32>,
    return
  }
  func.func @transform_0(%arg0: i32) -> (i32, i32) {
    %c0_i32 = arith.constant 0 : i32
    %c0_i32_0 = arith.constant 0 : i32
    return %arg0, %c0_i32 : i32, i32
  }
  func.func @transform_1(%arg0: i32) -> (i32, i32) {
    %c0_i32 = arith.constant 0 : i32
    %c0_i32_0 = arith.constant 0 : i32
    %c0_i32_1 = arith.constant 0 : i32
    return %c0_i32, %c0_i32_0 : i32, i32
  }
  func.func @transform_2(%arg0: i32) -> (i32, i32) {
    %c0_i32 = arith.constant 0 : i32
    %c0_i32_0 = arith.constant 0 : i32
    return %arg0, %c0_i32 : i32, i32
  }
}

</mosaic_0001>

<llo_original>
// kernel: tile.8
$region0: #{tile.8}
  #allocation0 [shape = 's32[1]{0}', space=sflag, size = 0x4, scoped, tag = 'scoped memory for tile.8']
  %s0 = inlined_call_operand.vmem [shape: f32[128], index: 0, kind: input, shape index: {}]
  %s1 = inlined_call_operand.vmem [shape: f32[16,128], index: 1, kind: output, shape index: {}]
  // Predicated region
  $region2: #{tile.8} parent=0 // pred_check
    _
  $region3: #{tile.8} parent=0 // pred_check_branch
    %3 = sbr.rel (0) target = $region5
  $region4: #{tile.8} parent=0 // pred_region
    _
  $region5: #{tile.8} parent=0 // pred_fallthru
    _
  %v4 = vld [vmem:[%s0] ss:$0 sm:$0xff]
  %5 = vst [vmem:[%s1] sm:$0xff] %v4
  %s6 = scalar_lea.vmem %s1, 8
  %7 = vst [vmem:[%s6] sm:$0xff] %v4

// kernel: lorenz_layer2.1
$region0: #{lorenz_layer2.1}
  #allocation0 [shape = 'u32[]', space=smem, size = 0x4, offset = 0x4, fixed_abs, tag = 'smem constant byte address 0x4 - core index']
  #allocation1 [shape = 'u32[72,128]{1,0:T(1,128)}', space=vmem, size = 0x9000, scoped, tag = 'internal scratch']
  %s0 = inlined_call_operand.vmem [shape: f32[1,2048], index: 0, kind: input, shape index: {}]
  %s1 = inlined_call_operand.vmem [shape: f32[1,2048], index: 1, kind: input, shape index: {}]
  %s2 = inlined_call_operand.hbm [shape: f32[1,2048], index: 2, kind: output, shape index: {}]
  %s3 = sld [smem:[#allocation0]]
  $region18: #{lorenz_layer2.1} parent=0
    _
  %s5 = ssub.s32 1, %s3
  %s6 = scalar_select 0, %s5, %s3
  $region1: #{lorenz_layer2.1} parent=0
    #allocation2 [shape = 'u8[8192]{0}', space=vmem, size = 0x2000, scoped, tag = 'output window, operand 0, single buffered']
    #allocation3 [shape = 's32[1]{0}', space=sflag, size = 0x4, scoped, tag = 'scoped memory for lorenz_layer2.1']
    %7 = vsyncpa [#allocation3], 0
    // Predicated region
    $region2: #{lorenz_layer2.1} parent=1 // pred_check
      _
    $region3: #{lorenz_layer2.1} parent=1 // pred_check_branch
      %9 = sbr.rel (0) target = $region5
    $region4: #{lorenz_layer2.1} parent=1 // pred_region
      _
    $region5: #{lorenz_layer2.1} parent=1 // pred_fallthru
      _
    // Predicated region
    $region6: #{lorenz_layer2.1} parent=1 // pred_check
      _
    $region7: #{lorenz_layer2.1} parent=1 // pred_check_branch
      %11 = sbr.rel (0) target = $region9
    $region8: #{lorenz_layer2.1} parent=1 // pred_region
      _
    $region9: #{lorenz_layer2.1} parent=1 // pred_fallthru
      _
    %v12 = vld [vmem:[%s0] sm:$0xff]
    %v13 = vld [vmem:[%s0 + $0x8] sm:$0xff]
    %v14 = vld [vmem:[%s1] sm:$0xff]
    %v15 = vld [vmem:[%s1 + $0x8] sm:$0xff]
    %v16 = vmul.f32 %v12, 0.02
    %v17 = vmul.f32 %v13, 0.02
    %v18 = vsub.f32 %v14, %v16
    %v19 = vsub.f32 %v15, %v17
    %v20 = vmul.f32 %v12, %v18
    %v21 = vmul.f32 %v13, %v19
    %22 = vst [vmem:[#allocation2] sm:$0xff] %v20
    %23 = vst [vmem:[#allocation2 + $0x8] sm:$0xff] %v21
    // Predicated region
    $region10: #{lorenz_layer2.1} parent=1 // pred_check
      _
    $region11: #{lorenz_layer2.1} parent=1 // pred_check_branch
      %25 = sbr.rel (0) target = $region13
    $region12: #{lorenz_layer2.1} parent=1 // pred_region
      %27 = vsyncadd [#allocation3], 0
      %s29 = sshll.u32 [#allocation2], 4
      %s30 = int_to_ptr.vmem [resolvable:$true] %s29
      %s31 = sshll.u32 %s2, 4
      %s32 = int_to_ptr.hbm [resolvable:$true] %s31
      %34 = dma.vmem_to_hbm [thread:$0]  %s30, 256, %s32, [#allocation3]
    $region13: #{lorenz_layer2.1} parent=1 // pred_fallthru
      _
    // Predicated region
    $region14: #{lorenz_layer2.1} parent=1 // pred_check
      _
    $region15: #{lorenz_layer2.1} parent=1 // pred_check_branch
      %36 = sbr.rel (0) target = $region17
    $region16: #{lorenz_layer2.1} parent=1 // pred_region
      %38 = dma.done [#allocation3], 256
    $region17: #{lorenz_layer2.1} parent=1 // pred_fallthru
      _
    %39 = vsyncpa [#allocation3], 1

</llo_original>
